<compile_context>
chip_gen: v6e
topology: v6e:2x2x1
jax: 0.10.0
libtpu: 0.0.40
codegen_flags: <defaults>
</compile_context>

<pallas_src>
import jax
import jax.numpy as jnp
from jax.experimental import pallas as pl
from jax.experimental.pallas import tpu as pltpu

IN_DIM = 256            # RNN hidden-state size fed to this head
HID = 256               # hidden_dim of util.init_mlp
Z_WHERE_TYPE = "3"      # branch implemented below
Z_WHERE_DIM = 3
OUT_DIM = 1 + 2 * Z_WHERE_DIM   # 7
OUT_PAD = 8             # final layer padded to 8 lanes (block spans full last dim)
MAX_TB = 512            # max batch-tile rows per grid step


def _round_up(x, m):
    return ((x + m - 1) // m) * m


def pres_where_kernel(h_ref, w1_ref, b1_ref, w2_ref, b2_ref, w3_ref, b3_ref,
                      out_ref):
    """3 MXU matmuls (bf16 in, f32 acc) + ReLU, fused sigmoid/softplus head."""
    h = h_ref[...].astype(jnp.bfloat16)                                  # (TB, IN_DIM)
    x1 = jnp.maximum(
        jnp.dot(h, w1_ref[...], preferred_element_type=jnp.float32)
        + b1_ref[...], 0.0)
    x2 = jnp.maximum(
        jnp.dot(x1.astype(jnp.bfloat16), w2_ref[...],
                preferred_element_type=jnp.float32) + b2_ref[...], 0.0)
    z = (jnp.dot(x2.astype(jnp.bfloat16), w3_ref[...],
                 preferred_element_type=jnp.float32) + b3_ref[...])      # (TB, 8) f32

    # Shared-exp epilogue: one exp feeds both sigmoid and softplus.
    em = jnp.exp(-jnp.abs(z))                               # exp(-|z|) in (0, 1]
    one_plus = 1.0 + em
    sp = jnp.maximum(z, 0.0) + jnp.log(one_plus)            # softplus(z), stable
    inv = pl.reciprocal(one_plus, approx=True)              # EUP approx divide
    sig = jnp.where(z >= 0.0, inv, em * inv)                # sigmoid(z)

    lane = jax.lax.broadcasted_iota(jnp.int32, z.shape, dimension=1)
    out = jnp.where(lane == 0, sig,                         # z_pres_p
          jnp.where(lane <= 2, z,                           # z_where shift loc (raw)
          jnp.where(lane == 3, sp + 1e-12,                  # z_where scale loc
                    sp)))                                   # z_where_scale (+ pad lane 7)
    out_ref[...] = out


@jax.jit
def pres_where_mlp(h, w1, b1, w2, b2, w3, b3):
    """h: (B, IN_DIM) f32.  w1/w2/w3: bf16 (see prepare_params), b1/b2/b3: f32."""
    B = h.shape[0]
    Bmin = _round_up(B, 16)
    if Bmin <= 16:
        TB = Bmin                                            # too small to split
    else:
        # >= 2 grid steps so both v7x TensorCores get work (no-op on v5e/v6e).
        TB = min(MAX_TB, _round_up(pl.cdiv(Bmin, 2), 16))
    Bpad = _round_up(Bmin, TB)
    if Bpad != B:
        h = jnp.pad(h, ((0, Bpad - B), (0, 0)))              # stays f32; no dtype copy

    weight_bytes = (2 * (IN_DIM * HID + HID * HID + HID * OUT_PAD)
                    + 4 * (HID + HID + OUT_PAD))
    cost = pl.CostEstimate(
        flops=2 * Bpad * (IN_DIM * HID + HID * HID + HID * OUT_PAD),
        transcendentals=3 * Bpad * OUT_PAD,                  # exp + log + recip per lane
        bytes_accessed=Bpad * IN_DIM * 4 + weight_bytes + Bpad * OUT_PAD * 4,
    )

    const = lambda r, c: pl.BlockSpec((r, c), lambda i: (0, 0))   # VMEM-resident params
    out = pl.pallas_call(
        pres_where_kernel,
        out_shape=jax.ShapeDtypeStruct((Bpad, OUT_PAD), jnp.float32),
        grid=(Bpad // TB,),
        in_specs=[
            pl.BlockSpec((TB, IN_DIM), lambda i: (i, 0)),    # h (batch-tiled, f32)
            const(IN_DIM, HID),                              # w1 (bf16)
            const(1, HID),                                   # b1 (f32)
            const(HID, HID),                                 # w2 (bf16)
            const(1, HID),                                   # b2 (f32)
            const(HID, OUT_PAD),                             # w3 (bf16, zero-padded lane 7)
            const(1, OUT_PAD),                               # b3 (f32, zero-padded lane 7)
        ],
        out_specs=pl.BlockSpec((TB, OUT_PAD), lambda i: (i, 0)),
        compiler_params=pltpu.CompilerParams(
            dimension_semantics=("parallel",)),              # megacore split on v7x
        cost_estimate=cost,
    )(h, w1, b1, w2, b2, w3, b3)

    # Glue: pure static slices of the fused slab (fuse away in XLA).
    out = out[:B]
    z_pres_p = out[:, 0:1]
    z_where_loc = out[:, 1:1 + Z_WHERE_DIM]
    z_where_scale = out[:, 1 + Z_WHERE_DIM:OUT_DIM]
    return z_pres_p, z_where_loc, z_where_scale


def init_params(key):
    """Deterministic synthetic f32 weights, shapes implied by util.init_mlp."""
    k1, k2, k3, k4, k5, k6 = jax.random.split(key, 6)
    s1 = 1.0 / jnp.sqrt(IN_DIM)
    s2 = 1.0 / jnp.sqrt(HID)
    w1 = jax.random.uniform(k1, (IN_DIM, HID), jnp.float32, -s1, s1)
    b1 = jax.random.uniform(k2, (1, HID), jnp.float32, -s1, s1)
    w2 = jax.random.uniform(k3, (HID, HID), jnp.float32, -s2, s2)
    b2 = jax.random.uniform(k4, (1, HID), jnp.float32, -s2, s2)
    w3 = jax.random.uniform(k5, (HID, OUT_DIM), jnp.float32, -s2, s2)
    b3 = jax.random.uniform(k6, (1, OUT_DIM), jnp.float32, -s2, s2)
    return w1, b1, w2, b2, w3, b3


def prepare_params(w1, b1, w2, b2, w3, b3):
    """One-time prep (outside the per-call path): bf16 weights, last layer padded
    to OUT_PAD lanes. Biases stay f32 (added after the f32 accumulation)."""
    w3p = jnp.zeros((HID, OUT_PAD), jnp.float32).at[:, :OUT_DIM].set(w3)
    b3p = jnp.zeros((1, OUT_PAD), jnp.float32).at[:, :OUT_DIM].set(b3)
    return (w1.astype(jnp.bfloat16), b1,
            w2.astype(jnp.bfloat16), b2,
            w3p.astype(jnp.bfloat16), b3p)


def pres_where_reference(h, w1, b1, w2, b2, w3, b3):
    """Pure-JAX f32 reference of the PyTorch forward (z_where_type '3')."""
    x = jax.nn.relu(h @ w1 + b1)
    x = jax.nn.relu(x @ w2 + b2)
    z = x @ w3 + b3
    z_pres_p = jax.nn.sigmoid(z[:, :1])
    z_where_loc = jnp.concatenate(
        [z[:, 1:3], jax.nn.softplus(z[:, 3:4]) + 1e-12], axis=-1)
    z_where_scale = jax.nn.softplus(z[:, Z_WHERE_DIM + 1:])
    return z_pres_p, z_where_loc, z_where_scale


if __name__ == "__main__":
    key = jax.random.PRNGKey(0)
    k_h, k_p = jax.random.split(key)
    # Small example batch; 24 pads to 32 -> TB=16 -> a 2-step "parallel" grid.
    # In real AIR deployment batch many timesteps/objects into one call
    # ((T,B,256) -> (T*B,256)) to amortize weight DMA + launch cost.
    B = 24
    h = jax.random.normal(k_h, (B, IN_DIM), jnp.float32)
    params_f32 = init_params(k_p)
    params = prepare_params(*params_f32)      # once, outside the jitted call

    z_pres_p, z_where_loc, z_where_scale = pres_where_mlp(h, *params)
    jax.block_until_ready((z_pres_p, z_where_loc, z_where_scale))

    assert z_pres_p.shape == (B, 1)
    assert z_where_loc.shape == (B, Z_WHERE_DIM)
    assert z_where_scale.shape == (B, Z_WHERE_DIM)

    # Tolerance check vs the f32 reference (bf16 MXU inputs + approx reciprocal).
    r_p, r_loc, r_scale = pres_where_reference(h, *params_f32)
    err = max(float(jnp.max(jnp.abs(z_pres_p - r_p))),
              float(jnp.max(jnp.abs(z_where_loc - r_loc))),
              float(jnp.max(jnp.abs(z_where_scale - r_scale))))
    assert err < 5e-2, f"max abs error vs f32 reference: {err}"
    assert bool(jnp.all(jnp.isfinite(z_pres_p)))

    print("KERNEL_OK")
</pallas_src>

<mosaic_0001>
module attributes {stable_mosaic.version = 11 : i64} {
  func.func @pres_where_kernel(%arg0: i32, %arg1: memref<16x256xf32, #tpu.memory_space<vmem>>, %arg2: memref<256x256xbf16, #tpu.memory_space<vmem>>, %arg3: memref<1x256xf32, #tpu.memory_space<vmem>>, %arg4: memref<256x256xbf16, #tpu.memory_space<vmem>>, %arg5: memref<1x256xf32, #tpu.memory_space<vmem>>, %arg6: memref<256x8xbf16, #tpu.memory_space<vmem>>, %arg7: memref<1x8xf32, #tpu.memory_space<vmem>>, %arg8: memref<16x8xf32, #tpu.memory_space<vmem>>) attributes {dimension_semantics = [#tpu.dimension_semantics<parallel>], iteration_bounds = array<i64: 2>, scalar_prefetch = 0 : i64, scratch_operands = 0 : i64, tpu.core_type = #tpu.core_type<tc>, window_params = [{transform_indices = @transform_0, window_bounds = array<i64: 16, 256>}, {pipeline_mode = #tpu.pipeline_mode<synchronous>, transform_indices = @transform_1, window_bounds = array<i64: 256, 256>}, {pipeline_mode = #tpu.pipeline_mode<synchronous>, transform_indices = @transform_2, window_bounds = array<i64: 1, 256>}, {pipeline_mode = #tpu.pipeline_mode<synchronous>, transform_indices = @transform_3, window_bounds = array<i64: 256, 256>}, {pipeline_mode = #tpu.pipeline_mode<synchronous>, transform_indices = @transform_4, window_bounds = array<i64: 1, 256>}, {pipeline_mode = #tpu.pipeline_mode<synchronous>, transform_indices = @transform_5, window_bounds = array<i64: 256, 8>}, {pipeline_mode = #tpu.pipeline_mode<synchronous>, transform_indices = @transform_6, window_bounds = array<i64: 1, 8>}, {transform_indices = @transform_7, window_bounds = array<i64: 16, 8>}]} {
    %c0 = arith.constant 0 : index
    %c0_0 = arith.constant 0 : index
    %0 = vector.load %arg1[%c0, %c0_0] : memref<16x256xf32, #tpu.memory_space<vmem>>, vector<16x256xf32>
    %1 = arith.truncf %0 : vector<16x256xf32> to vector<16x256xbf16>
    %c0_1 = arith.constant 0 : index
    %c0_2 = arith.constant 0 : index
    %2 = vector.load %arg2[%c0_1, %c0_2] : memref<256x256xbf16, #tpu.memory_space<vmem>>, vector<256x256xbf16>
    %cst = arith.constant dense<0.000000e+00> : vector<16x256xf32>
    %3 = tpu.matmul %1, %2, %cst {dimension_numbers = #tpu.dot_dimension_numbers<[1], [0], [0], [1], [0, 0, 1, 1], [], []>} : vector<16x256xbf16>, vector<256x256xbf16>, vector<16x256xf32> -> vector<16x256xf32>
    %c0_3 = arith.constant 0 : index
    %c0_4 = arith.constant 0 : index
    %4 = vector.load %arg3[%c0_3, %c0_4] : memref<1x256xf32, #tpu.memory_space<vmem>>, vector<1x256xf32>
    %5 = vector.broadcast %4 : vector<1x256xf32> to vector<16x256xf32>
    %6 = arith.addf %3, %5 : vector<16x256xf32>
    %cst_5 = arith.constant 0.000000e+00 : f32
    %7 = vector.broadcast %cst_5 : f32 to vector<16x256xf32>
    %8 = arith.maximumf %6, %7 : vector<16x256xf32>
    %9 = arith.truncf %8 : vector<16x256xf32> to vector<16x256xbf16>
    %c0_6 = arith.constant 0 : index
    %c0_7 = arith.constant 0 : index
    %10 = vector.load %arg4[%c0_6, %c0_7] : memref<256x256xbf16, #tpu.memory_space<vmem>>, vector<256x256xbf16>
    %cst_8 = arith.constant dense<0.000000e+00> : vector<16x256xf32>
    %11 = tpu.matmul %9, %10, %cst_8 {dimension_numbers = #tpu.dot_dimension_numbers<[1], [0], [0], [1], [0, 0, 1, 1], [], []>} : vector<16x256xbf16>, vector<256x256xbf16>, vector<16x256xf32> -> vector<16x256xf32>
    %c0_9 = arith.constant 0 : index
    %c0_10 = arith.constant 0 : index
    %12 = vector.load %arg5[%c0_9, %c0_10] : memref<1x256xf32, #tpu.memory_space<vmem>>, vector<1x256xf32>
    %13 = vector.broadcast %12 : vector<1x256xf32> to vector<16x256xf32>
    %14 = arith.addf %11, %13 : vector<16x256xf32>
    %cst_11 = arith.constant 0.000000e+00 : f32
    %15 = vector.broadcast %cst_11 : f32 to vector<16x256xf32>
    %16 = arith.maximumf %14, %15 : vector<16x256xf32>
    %17 = arith.truncf %16 : vector<16x256xf32> to vector<16x256xbf16>
    %c0_12 = arith.constant 0 : index
    %c0_13 = arith.constant 0 : index
    %18 = vector.load %arg6[%c0_12, %c0_13] : memref<256x8xbf16, #tpu.memory_space<vmem>>, vector<256x8xbf16>
    %cst_14 = arith.constant dense<0.000000e+00> : vector<16x8xf32>
    %19 = tpu.matmul %17, %18, %cst_14 {dimension_numbers = #tpu.dot_dimension_numbers<[1], [0], [0], [1], [0, 0, 1, 1], [], []>} : vector<16x256xbf16>, vector<256x8xbf16>, vector<16x8xf32> -> vector<16x8xf32>
    %c0_15 = arith.constant 0 : index
    %c0_16 = arith.constant 0 : index
    %20 = vector.load %arg7[%c0_15, %c0_16] : memref<1x8xf32, #tpu.memory_space<vmem>>, vector<1x8xf32>
    %21 = vector.broadcast %20 : vector<1x8xf32> to vector<16x8xf32>
    %22 = arith.addf %19, %21 : vector<16x8xf32>
    %23 = math.absf %22 : vector<16x8xf32>
    %cst_17 = arith.constant 0.000000e+00 : f32
    %24 = vector.broadcast %cst_17 : f32 to vector<16x8xf32>
    %25 = arith.subf %24, %23 : vector<16x8xf32>
    %26 = math.exp %25 : vector<16x8xf32>
    %cst_18 = arith.constant 1.000000e+00 : f32
    %27 = vector.broadcast %cst_18 : f32 to vector<16x8xf32>
    %28 = arith.addf %27, %26 : vector<16x8xf32>
    %cst_19 = arith.constant 0.000000e+00 : f32
    %29 = vector.broadcast %cst_19 : f32 to vector<16x8xf32>
    %30 = arith.maximumf %22, %29 : vector<16x8xf32>
    %31 = math.log %28 : vector<16x8xf32>
    %32 = arith.addf %30, %31 : vector<16x8xf32>
    %33 = tpu.reciprocal %28 {approx = true} : vector<16x8xf32> -> vector<16x8xf32>
    %cst_20 = arith.constant 0.000000e+00 : f32
    %34 = vector.broadcast %cst_20 : f32 to vector<16x8xf32>
    %35 = arith.cmpf oge, %22, %34 : vector<16x8xf32>
    %36 = arith.mulf %26, %33 : vector<16x8xf32>
    %37 = arith.select %35, %33, %36 : vector<16x8xi1>, vector<16x8xf32>
    %38 = tpu.iota {dimensions = array<i32: 1>} : vector<16x8xi32>
    %c0_i32 = arith.constant 0 : i32
    %39 = vector.broadcast %c0_i32 : i32 to vector<16x8xi32>
    %40 = arith.cmpi eq, %38, %39 : vector<16x8xi32>
    %c2_i32 = arith.constant 2 : i32
    %41 = vector.broadcast %c2_i32 : i32 to vector<16x8xi32>
    %42 = arith.cmpi sle, %38, %41 : vector<16x8xi32>
    %c3_i32 = arith.constant 3 : i32
    %43 = vector.broadcast %c3_i32 : i32 to vector<16x8xi32>
    %44 = arith.cmpi eq, %38, %43 : vector<16x8xi32>
    %cst_21 = arith.constant 9.99999996E-13 : f32
    %45 = vector.broadcast %cst_21 : f32 to vector<16x8xf32>
    %46 = arith.addf %32, %45 : vector<16x8xf32>
    %47 = arith.select %44, %46, %32 : vector<16x8xi1>, vector<16x8xf32>
    %48 = arith.select %42, %22, %47 : vector<16x8xi1>, vector<16x8xf32>
    %49 = arith.select %40, %37, %48 : vector<16x8xi1>, vector<16x8xf32>
    %c0_22 = arith.constant 0 : index
    %c0_23 = arith.constant 0 : index
    %50 = vector.load %arg8[%c0_22, %c0_23] : memref<16x8xf32, #tpu.memory_space<vmem>>, vector<16x8xf32>
    tpu.vector_store %arg8[%c0_22, %c0_23], %49 {strides = array<i32>} : memref<16x8xf32, #tpu.memory_space<vmem>>, vector<16x8xf32>,
    return
  }
  func.func @transform_0(%arg0: i32) -> (i32, i32) {
    %c0_i32 = arith.constant 0 : i32
    %c0_i32_0 = arith.constant 0 : i32
    return %arg0, %c0_i32 : i32, i32
  }
  func.func @transform_1(%arg0: i32) -> (i32, i32) {
    %c0_i32 = arith.constant 0 : i32
    %c0_i32_0 = arith.constant 0 : i32
    %c0_i32_1 = arith.constant 0 : i32
    return %c0_i32, %c0_i32_0 : i32, i32
  }
  func.func @transform_2(%arg0: i32) -> (i32, i32) {
    %c0_i32 = arith.constant 0 : i32
    %c0_i32_0 = arith.constant 0 : i32
    %c0_i32_1 = arith.constant 0 : i32
    return %c0_i32, %c0_i32_0 : i32, i32
  }
  func.func @transform_3(%arg0: i32) -> (i32, i32) {
    %c0_i32 = arith.constant 0 : i32
    %c0_i32_0 = arith.constant 0 : i32
    %c0_i32_1 = arith.constant 0 : i32
    return %c0_i32, %c0_i32_0 : i32, i32
  }
  func.func @transform_4(%arg0: i32) -> (i32, i32) {
    %c0_i32 = arith.constant 0 : i32
    %c0_i32_0 = arith.constant 0 : i32
    %c0_i32_1 = arith.constant 0 : i32
    return %c0_i32, %c0_i32_0 : i32, i32
  }
  func.func @transform_5(%arg0: i32) -> (i32, i32) {
    %c0_i32 = arith.constant 0 : i32
    %c0_i32_0 = arith.constant 0 : i32
    %c0_i32_1 = arith.constant 0 : i32
    return %c0_i32, %c0_i32_0 : i32, i32
  }
  func.func @transform_6(%arg0: i32) -> (i32, i32) {
    %c0_i32 = arith.constant 0 : i32
    %c0_i32_0 = arith.constant 0 : i32
    %c0_i32_1 = arith.constant 0 : i32
    return %c0_i32, %c0_i32_0 : i32, i32
  }
  func.func @transform_7(%arg0: i32) -> (i32, i32) {
    %c0_i32 = arith.constant 0 : i32
    %c0_i32_0 = arith.constant 0 : i32
    return %arg0, %c0_i32 : i32, i32
  }
}

</mosaic_0001>

<llo_original>
// kernel: pres_where_mlp.1
$region0: #{pres_where_mlp.1}
  #allocation0 [shape = 'u32[]', space=smem, size = 0x4, offset = 0x4, fixed_abs, tag = 'smem constant byte address 0x4 - core index']
  #allocation1 [shape = 'u32[144,128]{1,0:T(1,128)}', space=vmem, size = 0x12000, scoped, tag = 'internal scratch']
  %s0 = inlined_call_operand.vmem [shape: f32[32,256], index: 0, kind: input, shape index: {}]
  %s1 = inlined_call_operand.hbm [shape: bf16[256,256], index: 1, kind: input, shape index: {}]
  %s2 = inlined_call_operand.vmem [shape: f32[1,256], index: 2, kind: input, shape index: {}]
  %s3 = inlined_call_operand.hbm [shape: bf16[256,256], index: 3, kind: input, shape index: {}]
  %s4 = inlined_call_operand.vmem [shape: f32[1,256], index: 4, kind: input, shape index: {}]
  %s5 = inlined_call_operand.vmem [shape: bf16[256,8], index: 5, kind: input, shape index: {}]
  %s6 = inlined_call_operand.vmem [shape: f32[1,8], index: 6, kind: input, shape index: {}]
  %s7 = inlined_call_operand.vmem [shape: f32[32,8], index: 7, kind: output, shape index: {}]
  %s8 = sld [smem:[#allocation0]]
  $region69: #{pres_where_mlp.1} parent=0
    _
  %s10 = ssub.s32 1, %s8
  %s11 = scalar_select 0, %s10, %s8
  $region1: #{pres_where_mlp.1} parent=0
    #allocation2 [shape = 'u8[131072]{0}', space=vmem, size = 0x20000, scoped, tag = 'input window, operand 1, single buffered']
    #allocation3 [shape = 's32[2]{0}', space=sflag, size = 0x8, scoped, tag = 'scoped memory for pres_where_mlp.1']
    #allocation4 [shape = 'u8[131072]{0}', space=vmem, size = 0x20000, scoped, tag = 'input window, operand 3, single buffered']
    #allocation5 [shape = 's32[1]{0}', space=sflag, size = 0x4, scoped, tag = 'scoped memory for pres_where_mlp.1']
    %12 = vsyncpa [#allocation3], 0
    %13 = vsyncpa [#allocation5], 0
    loop: start=0, step=1, limit=4
    $region2: #{pres_where_mlp.1} parent=1 // loop_pre_header
      _
    $region3: #{pres_where_mlp.1} parent=1 // loop_header
      %s15 = sphi 0, %s19
      %p16 = scmp.ge.s32.totalorder %s15, 4
      %s25 = sphi 0, %s27
      %s28 = sphi 0, %s25
      %s29 = sphi 0, %s28
      %s45 = sphi 0, %s29
      %s49 = sphi 0, %s49
      %s51 = sphi 0, %s49
      %s52 = sphi 0, %s51
      %s66 = sphi 0, %s52
      %s70 = sphi 0, %s70
      %s72 = sphi 0, %s70
      %s73 = sphi 0, %s72
      %s87 = sphi 0, %s73
      %s91 = sphi 0, %s91
      %s93 = sphi 0, %s91
      %s94 = sphi 0, %s93
      %s108 = sphi 0, %s94
      %s112 = sphi 0, %s112
      %s114 = sphi 0, %s112
      %s115 = sphi 0, %s114
      %s129 = sphi 0, %s115
      %s133 = sphi 0, %s133
      %s135 = sphi 0, %s133
      %s136 = sphi 0, %s135
      %s150 = sphi 0, %s136
      %s154 = sphi 0, %s154
      %s156 = sphi 0, %s154
      %s157 = sphi 0, %s156
      %s171 = sphi 0, %s157
      %s177 = sphi 0, %s179
      %s180 = sphi 0, %s177
      %s181 = sphi 0, %s180
      %s197 = sphi 0, %s181
    $region4: #{pres_where_mlp.1} parent=1 // loop_header_branch
      %18 = sbr.rel (%p16) target = $region8
    $region5: #{pres_where_mlp.1} parent=1 // loop_body
      %s20 = ssub.s32 %s15, 1
      %s21 = ssub.s32 %s15, 2
      %s22 = sadd.s32 %s15, 1
      %s23 = ssub.s32 %s15, %s22
      %p24 = scmp.eq.s32.totalorder %s23, 0
      %s26 = sadd.s32 %s25, 1
      %s27 = scalar_select %p24, %s25, %s26
      %p30 = pneg %p24
      %p31 = scmp.eq.s32.totalorder %s15, 1
      %p32 = por %p30, %p31
      %p33 = scmp.ne.s32.totalorder %s25, %s28
      %p34 = scmp.eq.s32.totalorder %s15, 0
      %p35 = por %p33, %p34
      %p36 = scmp.ne.s32.totalorder %s25, %s28
      %p37 = scmp.eq.s32.totalorder %s20, 1
      %p38 = por %p36, %p37
      %p39 = scmp.ne.s32.totalorder %s28, %s29
      %p40 = scmp.eq.s32.totalorder %s20, 0
      %p41 = por %p39, %p40
      %p42 = scmp.ne.s32.totalorder %s28, %s29
      %p43 = scmp.eq.s32.totalorder %s21, 1
      %p44 = por %p42, %p43
      %p46 = scmp.ne.s32.totalorder %s29, %s45
      %p47 = scmp.eq.s32.totalorder %s21, 0
      %p48 = por %p46, %p47
      %s50 = sadd.s32 %s49, 1
      %p53 = scmp.eq.s32.totalorder %s15, 1
      %p54 = scmp.ne.s32.totalorder %s49, %s51
      %p55 = scmp.eq.s32.totalorder %s15, 0
      %p56 = por %p54, %p55
      %p57 = scmp.ne.s32.totalorder %s49, %s51
      %p58 = scmp.eq.s32.totalorder %s20, 1
      %p59 = por %p57, %p58
      %p60 = scmp.ne.s32.totalorder %s51, %s52
      %p61 = scmp.eq.s32.totalorder %s20, 0
      %p62 = por %p60, %p61
      %p63 = scmp.ne.s32.totalorder %s51, %s52
      %p64 = scmp.eq.s32.totalorder %s21, 1
      %p65 = por %p63, %p64
      %p67 = scmp.ne.s32.totalorder %s52, %s66
      %p68 = scmp.eq.s32.totalorder %s21, 0
      %p69 = por %p67, %p68
      %s71 = sadd.s32 %s70, 1
      %p74 = scmp.eq.s32.totalorder %s15, 1
      %p75 = scmp.ne.s32.totalorder %s70, %s72
      %p76 = scmp.eq.s32.totalorder %s15, 0
      %p77 = por %p75, %p76
      %p78 = scmp.ne.s32.totalorder %s70, %s72
      %p79 = scmp.eq.s32.totalorder %s20, 1
      %p80 = por %p78, %p79
      %p81 = scmp.ne.s32.totalorder %s72, %s73
      %p82 = scmp.eq.s32.totalorder %s20, 0
      %p83 = por %p81, %p82
      %p84 = scmp.ne.s32.totalorder %s72, %s73
      %p85 = scmp.eq.s32.totalorder %s21, 1
      %p86 = por %p84, %p85
      %p88 = scmp.ne.s32.totalorder %s73, %s87
      %p89 = scmp.eq.s32.totalorder %s21, 0
      %p90 = por %p88, %p89
      %s92 = sadd.s32 %s91, 1
      %p95 = scmp.eq.s32.totalorder %s15, 1
      %p96 = scmp.ne.s32.totalorder %s91, %s93
      %p97 = scmp.eq.s32.totalorder %s15, 0
      %p98 = por %p96, %p97
      %p99 = scmp.ne.s32.totalorder %s91, %s93
      %p100 = scmp.eq.s32.totalorder %s20, 1
      %p101 = por %p99, %p100
      %p102 = scmp.ne.s32.totalorder %s93, %s94
      %p103 = scmp.eq.s32.totalorder %s20, 0
      %p104 = por %p102, %p103
      %p105 = scmp.ne.s32.totalorder %s93, %s94
      %p106 = scmp.eq.s32.totalorder %s21, 1
      %p107 = por %p105, %p106
      %p109 = scmp.ne.s32.totalorder %s94, %s108
      %p110 = scmp.eq.s32.totalorder %s21, 0
      %p111 = por %p109, %p110
      %s113 = sadd.s32 %s112, 1
      %p116 = scmp.eq.s32.totalorder %s15, 1
      %p117 = scmp.ne.s32.totalorder %s112, %s114
      %p118 = scmp.eq.s32.totalorder %s15, 0
      %p119 = por %p117, %p118
      %p120 = scmp.ne.s32.totalorder %s112, %s114
      %p121 = scmp.eq.s32.totalorder %s20, 1
      %p122 = por %p120, %p121
      %p123 = scmp.ne.s32.totalorder %s114, %s115
      %p124 = scmp.eq.s32.totalorder %s20, 0
      %p125 = por %p123, %p124
      %p126 = scmp.ne.s32.totalorder %s114, %s115
      %p127 = scmp.eq.s32.totalorder %s21, 1
      %p128 = por %p126, %p127
      %p130 = scmp.ne.s32.totalorder %s115, %s129
      %p131 = scmp.eq.s32.totalorder %s21, 0
      %p132 = por %p130, %p131
      %s134 = sadd.s32 %s133, 1
      %p137 = scmp.eq.s32.totalorder %s15, 1
      %p138 = scmp.ne.s32.totalorder %s133, %s135
      %p139 = scmp.eq.s32.totalorder %s15, 0
      %p140 = por %p138, %p139
      %p141 = scmp.ne.s32.totalorder %s133, %s135
      %p142 = scmp.eq.s32.totalorder %s20, 1
      %p143 = por %p141, %p142
      %p144 = scmp.ne.s32.totalorder %s135, %s136
      %p145 = scmp.eq.s32.totalorder %s20, 0
      %p146 = por %p144, %p145
      %p147 = scmp.ne.s32.totalorder %s135, %s136
      %p148 = scmp.eq.s32.totalorder %s21, 1
      %p149 = por %p147, %p148
      %p151 = scmp.ne.s32.totalorder %s136, %s150
      %p152 = scmp.eq.s32.totalorder %s21, 0
      %p153 = por %p151, %p152
      %s155 = sadd.s32 %s154, 1
      %p158 = scmp.eq.s32.totalorder %s15, 1
      %p159 = scmp.ne.s32.totalorder %s154, %s156
      %p160 = scmp.eq.s32.totalorder %s15, 0
      %p161 = por %p159, %p160
      %p162 = scmp.ne.s32.totalorder %s154, %s156
      %p163 = scmp.eq.s32.totalorder %s20, 1
      %p164 = por %p162, %p163
      %p165 = scmp.ne.s32.totalorder %s156, %s157
      %p166 = scmp.eq.s32.totalorder %s20, 0
      %p167 = por %p165, %p166
      %p168 = scmp.ne.s32.totalorder %s156, %s157
      %p169 = scmp.eq.s32.totalorder %s21, 1
      %p170 = por %p168, %p169
      %p172 = scmp.ne.s32.totalorder %s157, %s171
      %p173 = scmp.eq.s32.totalorder %s21, 0
      %p174 = por %p172, %p173
      %s175 = ssub.s32 %s15, %s22
      %p176 = scmp.eq.s32.totalorder %s175, 0
      %s178 = sadd.s32 %s177, 1
      %s179 = scalar_select %p176, %s177, %s178
      %p182 = pneg %p176
      %p183 = scmp.eq.s32.totalorder %s15, 1
      %p184 = por %p182, %p183
      %p185 = scmp.ne.s32.totalorder %s177, %s180
      %p186 = scmp.eq.s32.totalorder %s15, 0
      %p187 = por %p185, %p186
      %p188 = scmp.ne.s32.totalorder %s177, %s180
      %p189 = scmp.eq.s32.totalorder %s20, 1
      %p190 = por %p188, %p189
      %p191 = scmp.ne.s32.totalorder %s180, %s181
      %p192 = scmp.eq.s32.totalorder %s20, 0
      %p193 = por %p191, %p192
      %p194 = scmp.ne.s32.totalorder %s180, %s181
      %p195 = scmp.eq.s32.totalorder %s21, 1
      %p196 = por %p194, %p195
      %p198 = scmp.ne.s32.totalorder %s181, %s197
      %p199 = scmp.eq.s32.totalorder %s21, 0
      %p200 = por %p198, %p199
      %p201 = scmp.le.s32.totalorder 1, %s15
      %p202 = scmp.lt.s32.totalorder %s15, 3
      %p203 = pnand %p201, %p202
      %p204 = pneg %p203
      // Predicated region
      $region9: #{pres_where_mlp.1} parent=5 // pred_check
        _
      $region10: #{pres_where_mlp.1} parent=5 // pred_check_branch
        %206 = sbr.rel (%p203) target = $region12
      $region11: #{pres_where_mlp.1} parent=5 // pred_region
        %s207 = ssub.s32 %s15, 1
        // Predicated region
        $region13: #{pres_where_mlp.1} parent=11 // pred_check
          %p208 = pneg %p62
        $region14: #{pres_where_mlp.1} parent=11 // pred_check_branch
          %210 = sbr.rel (%p208) target = $region16
        $region15: #{pres_where_mlp.1} parent=11 // pred_region
          %s212 = ssub.s32 4096, 4096
          %213 = vsyncadd [#allocation3], %s212
          %s214 = sshll.u32 [#allocation2], 4
          %s215 = int_to_ptr.vmem [resolvable:$true] %s214
          %220 = dma.hbm_to_vmem [thread:$0]  %s1, 4096, %s215, [#allocation3], 128, 128, 8
        $region16: #{pres_where_mlp.1} parent=11 // pred_fallthru
          _
        // Predicated region
        $region17: #{pres_where_mlp.1} parent=11 // pred_check
          %p221 = pneg %p83
        $region18: #{pres_where_mlp.1} parent=11 // pred_check_branch
          %223 = sbr.rel (%p221) target = $region20
        $region19: #{pres_where_mlp.1} parent=11 // pred_region
          _
        $region20: #{pres_where_mlp.1} parent=11 // pred_fallthru
          _
        // Predicated region
        $region21: #{pres_where_mlp.1} parent=11 // pred_check
          %p224 = pneg %p104
        $region22: #{pres_where_mlp.1} parent=11 // pred_check_branch
          %226 = sbr.rel (%p224) target = $region24
        $region23: #{pres_where_mlp.1} parent=11 // pred_region
          %s228 = ssub.s32 4096, 4096
          %229 = vsyncadd [#allocation5], %s228
          %s230 = sshll.u32 [#allocation4], 4
          %s231 = int_to_ptr.vmem [resolvable:$true] %s230
          %236 = dma.hbm_to_vmem [thread:$0]  %s3, 4096, %s231, [#allocation5], 128, 128, 8
        $region24: #{pres_where_mlp.1} parent=11 // pred_fallthru
          _
        // Predicated region
        $region25: #{pres_where_mlp.1} parent=11 // pred_check
          %p237 = pneg %p125
        $region26: #{pres_where_mlp.1} parent=11 // pred_check_branch
          %239 = sbr.rel (%p237) target = $region28
        $region27: #{pres_where_mlp.1} parent=11 // pred_region
          _
        $region28: #{pres_where_mlp.1} parent=11 // pred_fallthru
          _
        // Predicated region
        $region29: #{pres_where_mlp.1} parent=11 // pred_check
          %p240 = pneg %p146
        $region30: #{pres_where_mlp.1} parent=11 // pred_check_branch
          %242 = sbr.rel (%p240) target = $region32
        $region31: #{pres_where_mlp.1} parent=11 // pred_region
          _
        $region32: #{pres_where_mlp.1} parent=11 // pred_fallthru
          _
        // Predicated region
        $region33: #{pres_where_mlp.1} parent=11 // pred_check
          %p243 = pneg %p167
        $region34: #{pres_where_mlp.1} parent=11 // pred_check_branch
          %245 = sbr.rel (%p243) target = $region36
        $region35: #{pres_where_mlp.1} parent=11 // pred_region
          _
        $region36: #{pres_where_mlp.1} parent=11 // pred_fallthru
          _
      $region12: #{pres_where_mlp.1} parent=5 // pred_fallthru
        _
      %p246 = scmp.lt.s32.totalorder %s15, 2
      // Predicated region
      $region37: #{pres_where_mlp.1} parent=5 // pred_check
        %p247 = pneg %p246
      $region38: #{pres_where_mlp.1} parent=5 // pred_check_branch
        %249 = sbr.rel (%p247) target = $region40
      $region39: #{pres_where_mlp.1} parent=5 // pred_region
        // Predicated region
        $region41: #{pres_where_mlp.1} parent=39 // pred_check
          %p250 = pneg %p35
        $region42: #{pres_where_mlp.1} parent=39 // pred_check_branch
          %252 = sbr.rel (%p250) target = $region44
        $region43: #{pres_where_mlp.1} parent=39 // pred_region
          %s253 = smul.u32 2, %s15
          %p254 = scmp.lt.s32.totalorder %s253, 3
          %s255 = scalar_select %p254, %s253, 3
          %s256 = smul.addr %s255, 2
          %s257 = smul.addr %s256, 8
          %s258 = scalar_lea.vmem %s0, %s257
          %s259 = smul.u32 2, %s15
        $region44: #{pres_where_mlp.1} parent=39 // pred_fallthru
          _
      $region40: #{pres_where_mlp.1} parent=5 // pred_fallthru
        _
      %p260 = scmp.le.s32.totalorder 1, %s15
      %p261 = scmp.lt.s32.totalorder %s15, 3
      %p262 = pnand %p260, %p261
      %p263 = pneg %p262
      // Predicated region
      $region45: #{pres_where_mlp.1} parent=5 // pred_check
        _
      $region46: #{pres_where_mlp.1} parent=5 // pred_check_branch
        %265 = sbr.rel (%p262) target = $region48
      $region47: #{pres_where_mlp.1} parent=5 // pred_region
        %s266 = ssub.s32 %s15, 1
        // Predicated region
        $region49: #{pres_where_mlp.1} parent=47 // pred_check
          %p267 = pneg %p62
        $region50: #{pres_where_mlp.1} parent=47 // pred_check_branch
          %269 = sbr.rel (%p267) target = $region52
        $region51: #{pres_where_mlp.1} parent=47 // pred_region
          %270 = dma.done [#allocation3], 4096
        $region52: #{pres_where_mlp.1} parent=47 // pred_fallthru
          _
        // Predicated region
        $region53: #{pres_where_mlp.1} parent=47 // pred_check
          %p271 = pneg %p104
        $region54: #{pres_where_mlp.1} parent=47 // pred_check_branch
          %273 = sbr.rel (%p271) target = $region56
        $region55: #{pres_where_mlp.1} parent=47 // pred_region
          %274 = dma.done [#allocation5], 4096
        $region56: #{pres_where_mlp.1} parent=47 // pred_fallthru
          _
        %s275 = smul.u32 2, %s20
        %p276 = scmp.lt.s32.totalorder %s275, 3
        %s277 = scalar_select %p276, %s275, 3
        %s278 = smul.addr %s277, 2
        %s279 = smul.addr %s278, 8
        %s280 = scalar_lea.vmem %s0, %s279
        %p281 = pneg %p41
        %p282 = pneg %p38
        %p283 = pneg %p62
        %p284 = pneg %p59
        %p285 = pneg %p83
        %p286 = pneg %p80
        %p287 = pneg %p104
        %p288 = pneg %p101
        %p289 = pneg %p125
        %p290 = pneg %p122
        %p291 = pneg %p146
        %p292 = pneg %p143
        %p293 = pneg %p167
        %p294 = pneg %p164
        %p295 = pneg %p193
        %p296 = pneg %p190
        %s297 = smul.u32 2, %s20
        %p298 = scmp.lt.s32.totalorder %s297, 3
        %s299 = scalar_select %p298, %s297, 3
        %s300 = smul.addr %s299, 8
        %s301 = scalar_lea.vmem %s7, %s300
        %s302 = smul.u32 2, %s20
        %p303 = scmp.lt.s32.totalorder %s302, 3
        %s304 = scalar_select %p303, %s302, 3
        %s305 = smul.addr %s304, 2
        %s306 = smul.addr %s305, 8
        %s307 = scalar_lea.vmem %s0, %s306
        %s308 = smul.u32 2, %s20
        %s309 = smul.u32 2, %s20
        %p310 = scmp.lt.s32.totalorder %s309, 3
        %s311 = scalar_select %p310, %s309, 3
        %s312 = smul.addr %s311, 8
        %s313 = scalar_lea.vmem %s7, %s312
        %s314 = smul.u32 2, %s20
        %v316 = vld [vmem:[%s307] sm:$0xff]
        %v317 = vld [vmem:[%s307 + $0x8] sm:$0xff]
        %v318 = vld [vmem:[%s307 + $0x10] sm:$0xff]
        %v319 = vld [vmem:[%s307 + $0x18] sm:$0xff]
        %v320 = vpack.c.bf16 %v318, %v316
        %v321 = vpack.c.bf16 %v319, %v317
        %v322 = vld [vmem:[#allocation2] sm:$0xff]
        %v323 = vld [vmem:[#allocation2 + $0x8] sm:$0xff]
        %v324 = vld [vmem:[#allocation2 + $0x10] sm:$0xff]
        %v325 = vld [vmem:[#allocation2 + $0x18] sm:$0xff]
        %v326 = vld [vmem:[#allocation2 + $0x20] sm:$0xff]
        %v327 = vld [vmem:[#allocation2 + $0x28] sm:$0xff]
        %v328 = vld [vmem:[#allocation2 + $0x30] sm:$0xff]
        %v329 = vld [vmem:[#allocation2 + $0x38] sm:$0xff]
        %v330 = vld [vmem:[#allocation2 + $0x40] sm:$0xff]
        %v331 = vld [vmem:[#allocation2 + $0x48] sm:$0xff]
        %v332 = vld [vmem:[#allocation2 + $0x50] sm:$0xff]
        %v333 = vld [vmem:[#allocation2 + $0x58] sm:$0xff]
        %v334 = vld [vmem:[#allocation2 + $0x60] sm:$0xff]
        %v335 = vld [vmem:[#allocation2 + $0x68] sm:$0xff]
        %v336 = vld [vmem:[#allocation2 + $0x70] sm:$0xff]
        %v337 = vld [vmem:[#allocation2 + $0x78] sm:$0xff]
        %v338 = vld [vmem:[#allocation2 + $0x80] sm:$0xff]
        %v339 = vld [vmem:[#allocation2 + $0x88] sm:$0xff]
        %v340 = vld [vmem:[#allocation2 + $0x90] sm:$0xff]
        %v341 = vld [vmem:[#allocation2 + $0x98] sm:$0xff]
        %v342 = vld [vmem:[#allocation2 + $0xa0] sm:$0xff]
        %v343 = vld [vmem:[#allocation2 + $0xa8] sm:$0xff]
        %v344 = vld [vmem:[#allocation2 + $0xb0] sm:$0xff]
        %v345 = vld [vmem:[#allocation2 + $0xb8] sm:$0xff]
        %v346 = vld [vmem:[#allocation2 + $0xc0] sm:$0xff]
        %v347 = vld [vmem:[#allocation2 + $0xc8] sm:$0xff]
        %v348 = vld [vmem:[#allocation2 + $0xd0] sm:$0xff]
        %v349 = vld [vmem:[#allocation2 + $0xd8] sm:$0xff]
        %v350 = vld [vmem:[#allocation2 + $0xe0] sm:$0xff]
        %v351 = vld [vmem:[#allocation2 + $0xe8] sm:$0xff]
        %v352 = vld [vmem:[#allocation2 + $0xf0] sm:$0xff]
        %v353 = vld [vmem:[#allocation2 + $0xf8] sm:$0xff]
        %v354 = vld [vmem:[%s2] sm:$0x3]
        %v356 = vlaneseq
        %v357 = vshrl.u32 %v356, 7
        %v358 = vsub.s32 0, %v357
        %v359 = vrot.slane %v354, %v358
        %v360 = vlaneseq
        %v361 = vshrl.u32 %v360, 7
        %v362 = vsub.s32 1, %v361
        %v363 = vrot.slane %v354, %v362
        %v398 = vunpack.c.l.b16 %v322
        %v399 = vunpack.c.h.b16 %v322
        %v400 = vunpack.c.l.b16 %v323
        %v401 = vunpack.c.h.b16 %v323
        %v402 = vunpack.c.l.b16 %v324
        %v403 = vunpack.c.h.b16 %v324
        %v404 = vunpack.c.l.b16 %v325
        %v405 = vunpack.c.h.b16 %v325
        %v406 = vunpack.c.l.b16 %v326
        %v407 = vunpack.c.h.b16 %v326
        %v408 = vunpack.c.l.b16 %v327
        %v409 = vunpack.c.h.b16 %v327
        %v410 = vunpack.c.l.b16 %v328
        %v411 = vunpack.c.h.b16 %v328
        %v412 = vunpack.c.l.b16 %v329
        %v413 = vunpack.c.h.b16 %v329
        %v414 = vunpack.c.l.b16 %v330
        %v415 = vunpack.c.h.b16 %v330
        %v416 = vunpack.c.l.b16 %v331
        %v417 = vunpack.c.h.b16 %v331
        %v418 = vunpack.c.l.b16 %v332
        %v419 = vunpack.c.h.b16 %v332
        %v420 = vunpack.c.l.b16 %v333
        %v421 = vunpack.c.h.b16 %v333
        %v422 = vunpack.c.l.b16 %v334
        %v423 = vunpack.c.h.b16 %v334
        %v424 = vunpack.c.l.b16 %v335
        %v425 = vunpack.c.h.b16 %v335
        %v426 = vunpack.c.l.b16 %v336
        %v427 = vunpack.c.h.b16 %v336
        %v428 = vunpack.c.l.b16 %v337
        %v429 = vunpack.c.h.b16 %v337
        %v430 = vunpack.c.l.b16 %v338
        %v431 = vunpack.c.h.b16 %v338
        %v432 = vunpack.c.l.b16 %v339
        %v433 = vunpack.c.h.b16 %v339
        %v434 = vunpack.c.l.b16 %v340
        %v435 = vunpack.c.h.b16 %v340
        %v436 = vunpack.c.l.b16 %v341
        %v437 = vunpack.c.h.b16 %v341
        %v438 = vunpack.c.l.b16 %v342
        %v439 = vunpack.c.h.b16 %v342
        %v440 = vunpack.c.l.b16 %v343
        %v441 = vunpack.c.h.b16 %v343
        %v442 = vunpack.c.l.b16 %v344
        %v443 = vunpack.c.h.b16 %v344
        %v444 = vunpack.c.l.b16 %v345
        %v445 = vunpack.c.h.b16 %v345
        %v446 = vunpack.c.l.b16 %v346
        %v447 = vunpack.c.h.b16 %v346
        %v448 = vunpack.c.l.b16 %v347
        %v449 = vunpack.c.h.b16 %v347
        %v450 = vunpack.c.l.b16 %v348
        %v451 = vunpack.c.h.b16 %v348
        %v452 = vunpack.c.l.b16 %v349
        %v453 = vunpack.c.h.b16 %v349
        %v454 = vunpack.c.l.b16 %v350
        %v455 = vunpack.c.h.b16 %v350
        %v456 = vunpack.c.l.b16 %v351
        %v457 = vunpack.c.h.b16 %v351
        %v458 = vunpack.c.l.b16 %v352
        %v459 = vunpack.c.h.b16 %v352
        %v460 = vunpack.c.l.b16 %v353
        %v461 = vunpack.c.h.b16 %v353
        %v462 = vpack.c.b16 %v400, %v398
        %v463 = vpack.c.b16 %v401, %v399
        %v464 = vpack.c.b16 %v404, %v402
        %v465 = vpack.c.b16 %v405, %v403
        %v466 = vpack.c.b16 %v408, %v406
        %v467 = vpack.c.b16 %v409, %v407
        %v468 = vpack.c.b16 %v412, %v410
        %v469 = vpack.c.b16 %v413, %v411
        %v470 = vpack.c.b16 %v416, %v414
        %v471 = vpack.c.b16 %v417, %v415
        %v472 = vpack.c.b16 %v420, %v418
        %v473 = vpack.c.b16 %v421, %v419
        %v474 = vpack.c.b16 %v424, %v422
        %v475 = vpack.c.b16 %v425, %v423
        %v476 = vpack.c.b16 %v428, %v426
        %v477 = vpack.c.b16 %v429, %v427
        %v478 = vpack.c.b16 %v432, %v430
        %v479 = vpack.c.b16 %v433, %v431
        %v480 = vpack.c.b16 %v436, %v434
        %v481 = vpack.c.b16 %v437, %v435
        %v482 = vpack.c.b16 %v440, %v438
        %v483 = vpack.c.b16 %v441, %v439
        %v484 = vpack.c.b16 %v444, %v442
        %v485 = vpack.c.b16 %v445, %v443
        %v486 = vpack.c.b16 %v448, %v446
        %v487 = vpack.c.b16 %v449, %v447
        %v488 = vpack.c.b16 %v452, %v450
        %v489 = vpack.c.b16 %v453, %v451
        %v490 = vpack.c.b16 %v456, %v454
        %v491 = vpack.c.b16 %v457, %v455
        %v492 = vpack.c.b16 %v460, %v458
        %v493 = vpack.c.b16 %v461, %v459
        %526 = vmatprep.subr.bf16.mxu0 %v477
        %527 = vmatpush1.bf16.msra.mxu0 %v476
        %528 = vmatprep.subr.bf16.mxu0 %v475
        %529 = vmatpush1.bf16.msra.mxu0 %v474
        %530 = vmatprep.subr.bf16.mxu0 %v473
        %531 = vmatpush1.bf16.msra.mxu0 %v472
        %532 = vmatprep.subr.bf16.mxu0 %v471
        %533 = vmatpush1.bf16.msra.mxu0 %v470
        %534 = vmatprep.subr.bf16.mxu0 %v469
        %535 = vmatpush1.bf16.msra.mxu0 %v468
        %536 = vmatprep.subr.bf16.mxu0 %v467
        %537 = vmatpush1.bf16.msra.mxu0 %v466
        %538 = vmatprep.subr.bf16.mxu0 %v465
        %539 = vmatpush1.bf16.msra.mxu0 %v464
        %540 = vmatprep.subr.bf16.mxu0 %v463
        %541 = vmatpush1.bf16.msra.mxu0 %v462
        %542 = vmatprep.subr.bf16.mxu0 %v493
        %543 = vmatpush2.bf16.msra.mxu0 %v492
        %544 = vmatprep.subr.bf16.mxu0 %v491
        %545 = vmatpush2.bf16.msra.mxu0 %v490
        %546 = vmatprep.subr.bf16.mxu0 %v489
        %547 = vmatpush2.bf16.msra.mxu0 %v488
        %548 = vmatprep.subr.bf16.mxu0 %v487
        %549 = vmatpush2.bf16.msra.mxu0 %v486
        %550 = vmatprep.subr.bf16.mxu0 %v485
        %551 = vmatpush2.bf16.msra.mxu0 %v484
        %552 = vmatprep.subr.bf16.mxu0 %v483
        %553 = vmatpush2.bf16.msra.mxu0 %v482
        %554 = vmatprep.subr.bf16.mxu0 %v481
        %555 = vmatpush2.bf16.msra.mxu0 %v480
        %556 = vmatprep.subr.bf16.mxu0 %v479
        %557 = vmatpush2.bf16.msra.mxu0 %v478
        %558 = vmatprep.mubr.bf16.mxu0 %v321
        %559 = vmatmul.mubr.bf16.gmra.mxu0 %v320
        %v560 = vpop.f32.mrf.mxu0
        %v561 = vadd.f32 %v359, %v560
        %v562 = vpop.f32.mrf.mxu0
        %v563 = vadd.f32 %v363, %v562
        %v564 = vpop.f32.mrf.mxu0
        %v565 = vadd.f32 %v359, %v564
        %v566 = vpop.f32.mrf.mxu0
        %v567 = vadd.f32 %v363, %v566
        %568 = vdwg.mxu0
        %v569 = vmax.f32 %v561, 0.0
        %v570 = vmax.f32 %v563, 0.0
        %v571 = vmax.f32 %v565, 0.0
        %v572 = vmax.f32 %v567, 0.0
        %v573 = vpack.c.bf16 %v571, %v569
        %v574 = vpack.c.bf16 %v572, %v570
        %v575 = vld [vmem:[#allocation4] sm:$0xff]
        %v576 = vld [vmem:[#allocation4 + $0x8] sm:$0xff]
        %v577 = vld [vmem:[#allocation4 + $0x10] sm:$0xff]
        %v578 = vld [vmem:[#allocation4 + $0x18] sm:$0xff]
        %v579 = vld [vmem:[#allocation4 + $0x20] sm:$0xff]
        %v580 = vld [vmem:[#allocation4 + $0x28] sm:$0xff]
        %v581 = vld [vmem:[#allocation4 + $0x30] sm:$0xff]
        %v582 = vld [vmem:[#allocation4 + $0x38] sm:$0xff]
        %v583 = vld [vmem:[#allocation4 + $0x40] sm:$0xff]
        %v584 = vld [vmem:[#allocation4 + $0x48] sm:$0xff]
        %v585 = vld [vmem:[#allocation4 + $0x50] sm:$0xff]
        %v586 = vld [vmem:[#allocation4 + $0x58] sm:$0xff]
        %v587 = vld [vmem:[#allocation4 + $0x60] sm:$0xff]
        %v588 = vld [vmem:[#allocation4 + $0x68] sm:$0xff]
        %v589 = vld [vmem:[#allocation4 + $0x70] sm:$0xff]
        %v590 = vld [vmem:[#allocation4 + $0x78] sm:$0xff]
        %v591 = vld [vmem:[#allocation4 + $0x80] sm:$0xff]
        %v592 = vld [vmem:[#allocation4 + $0x88] sm:$0xff]
        %v593 = vld [vmem:[#allocation4 + $0x90] sm:$0xff]
        %v594 = vld [vmem:[#allocation4 + $0x98] sm:$0xff]
        %v595 = vld [vmem:[#allocation4 + $0xa0] sm:$0xff]
        %v596 = vld [vmem:[#allocation4 + $0xa8] sm:$0xff]
        %v597 = vld [vmem:[#allocation4 + $0xb0] sm:$0xff]
        %v598 = vld [vmem:[#allocation4 + $0xb8] sm:$0xff]
        %v599 = vld [vmem:[#allocation4 + $0xc0] sm:$0xff]
        %v600 = vld [vmem:[#allocation4 + $0xc8] sm:$0xff]
        %v601 = vld [vmem:[#allocation4 + $0xd0] sm:$0xff]
        %v602 = vld [vmem:[#allocation4 + $0xd8] sm:$0xff]
        %v603 = vld [vmem:[#allocation4 + $0xe0] sm:$0xff]
        %v604 = vld [vmem:[#allocation4 + $0xe8] sm:$0xff]
        %v605 = vld [vmem:[#allocation4 + $0xf0] sm:$0xff]
        %v606 = vld [vmem:[#allocation4 + $0xf8] sm:$0xff]
        %v607 = vld [vmem:[%s4] sm:$0x3]
        %v609 = vlaneseq
        %v610 = vshrl.u32 %v609, 7
        %v611 = vsub.s32 0, %v610
        %v612 = vrot.slane %v607, %v611
        %v613 = vlaneseq
        %v614 = vshrl.u32 %v613, 7
        %v615 = vsub.s32 1, %v614
        %v616 = vrot.slane %v607, %v615
        %v651 = vunpack.c.l.b16 %v575
        %v652 = vunpack.c.h.b16 %v575
        %v653 = vunpack.c.l.b16 %v576
        %v654 = vunpack.c.h.b16 %v576
        %v655 = vunpack.c.l.b16 %v577
        %v656 = vunpack.c.h.b16 %v577
        %v657 = vunpack.c.l.b16 %v578
        %v658 = vunpack.c.h.b16 %v578
        %v659 = vunpack.c.l.b16 %v579
        %v660 = vunpack.c.h.b16 %v579
        %v661 = vunpack.c.l.b16 %v580
        %v662 = vunpack.c.h.b16 %v580
        %v663 = vunpack.c.l.b16 %v581
        %v664 = vunpack.c.h.b16 %v581
        %v665 = vunpack.c.l.b16 %v582
        %v666 = vunpack.c.h.b16 %v582
        %v667 = vunpack.c.l.b16 %v583
        %v668 = vunpack.c.h.b16 %v583
        %v669 = vunpack.c.l.b16 %v584
        %v670 = vunpack.c.h.b16 %v584
        %v671 = vunpack.c.l.b16 %v585
        %v672 = vunpack.c.h.b16 %v585
        %v673 = vunpack.c.l.b16 %v586
        %v674 = vunpack.c.h.b16 %v586
        %v675 = vunpack.c.l.b16 %v587
        %v676 = vunpack.c.h.b16 %v587
        %v677 = vunpack.c.l.b16 %v588
        %v678 = vunpack.c.h.b16 %v588
        %v679 = vunpack.c.l.b16 %v589
        %v680 = vunpack.c.h.b16 %v589
        %v681 = vunpack.c.l.b16 %v590
        %v682 = vunpack.c.h.b16 %v590
        %v683 = vunpack.c.l.b16 %v591
        %v684 = vunpack.c.h.b16 %v591
        %v685 = vunpack.c.l.b16 %v592
        %v686 = vunpack.c.h.b16 %v592
        %v687 = vunpack.c.l.b16 %v593
        %v688 = vunpack.c.h.b16 %v593
        %v689 = vunpack.c.l.b16 %v594
        %v690 = vunpack.c.h.b16 %v594
        %v691 = vunpack.c.l.b16 %v595
        %v692 = vunpack.c.h.b16 %v595
        %v693 = vunpack.c.l.b16 %v596
        %v694 = vunpack.c.h.b16 %v596
        %v695 = vunpack.c.l.b16 %v597
        %v696 = vunpack.c.h.b16 %v597
        %v697 = vunpack.c.l.b16 %v598
        %v698 = vunpack.c.h.b16 %v598
        %v699 = vunpack.c.l.b16 %v599
        %v700 = vunpack.c.h.b16 %v599
        %v701 = vunpack.c.l.b16 %v600
        %v702 = vunpack.c.h.b16 %v600
        %v703 = vunpack.c.l.b16 %v601
        %v704 = vunpack.c.h.b16 %v601
        %v705 = vunpack.c.l.b16 %v602
        %v706 = vunpack.c.h.b16 %v602
        %v707 = vunpack.c.l.b16 %v603
        %v708 = vunpack.c.h.b16 %v603
        %v709 = vunpack.c.l.b16 %v604
        %v710 = vunpack.c.h.b16 %v604
        %v711 = vunpack.c.l.b16 %v605
        %v712 = vunpack.c.h.b16 %v605
        %v713 = vunpack.c.l.b16 %v606
        %v714 = vunpack.c.h.b16 %v606
        %v715 = vpack.c.b16 %v653, %v651
        %v716 = vpack.c.b16 %v654, %v652
        %v717 = vpack.c.b16 %v657, %v655
        %v718 = vpack.c.b16 %v658, %v656
        %v719 = vpack.c.b16 %v661, %v659
        %v720 = vpack.c.b16 %v662, %v660
        %v721 = vpack.c.b16 %v665, %v663
        %v722 = vpack.c.b16 %v666, %v664
        %v723 = vpack.c.b16 %v669, %v667
        %v724 = vpack.c.b16 %v670, %v668
        %v725 = vpack.c.b16 %v673, %v671
        %v726 = vpack.c.b16 %v674, %v672
        %v727 = vpack.c.b16 %v677, %v675
        %v728 = vpack.c.b16 %v678, %v676
        %v729 = vpack.c.b16 %v681, %v679
        %v730 = vpack.c.b16 %v682, %v680
        %v731 = vpack.c.b16 %v685, %v683
        %v732 = vpack.c.b16 %v686, %v684
        %v733 = vpack.c.b16 %v689, %v687
        %v734 = vpack.c.b16 %v690, %v688
        %v735 = vpack.c.b16 %v693, %v691
        %v736 = vpack.c.b16 %v694, %v692
        %v737 = vpack.c.b16 %v697, %v695
        %v738 = vpack.c.b16 %v698, %v696
        %v739 = vpack.c.b16 %v701, %v699
        %v740 = vpack.c.b16 %v702, %v700
        %v741 = vpack.c.b16 %v705, %v703
        %v742 = vpack.c.b16 %v706, %v704
        %v743 = vpack.c.b16 %v709, %v707
        %v744 = vpack.c.b16 %v710, %v708
        %v745 = vpack.c.b16 %v713, %v711
        %v746 = vpack.c.b16 %v714, %v712
        %779 = vmatprep.subr.bf16.mxu0 %v730
        %780 = vmatpush1.bf16.msra.mxu0 %v729
        %781 = vmatprep.subr.bf16.mxu0 %v728
        %782 = vmatpush1.bf16.msra.mxu0 %v727
        %783 = vmatprep.subr.bf16.mxu0 %v726
        %784 = vmatpush1.bf16.msra.mxu0 %v725
        %785 = vmatprep.subr.bf16.mxu0 %v724
        %786 = vmatpush1.bf16.msra.mxu0 %v723
        %787 = vmatprep.subr.bf16.mxu0 %v722
        %788 = vmatpush1.bf16.msra.mxu0 %v721
        %789 = vmatprep.subr.bf16.mxu0 %v720
        %790 = vmatpush1.bf16.msra.mxu0 %v719
        %791 = vmatprep.subr.bf16.mxu0 %v718
        %792 = vmatpush1.bf16.msra.mxu0 %v717
        %793 = vmatprep.subr.bf16.mxu0 %v716
        %794 = vmatpush1.bf16.msra.mxu0 %v715
        %795 = vmatprep.subr.bf16.mxu0 %v746
        %796 = vmatpush2.bf16.msra.mxu0 %v745
        %797 = vmatprep.subr.bf16.mxu0 %v744
        %798 = vmatpush2.bf16.msra.mxu0 %v743
        %799 = vmatprep.subr.bf16.mxu0 %v742
        %800 = vmatpush2.bf16.msra.mxu0 %v741
        %801 = vmatprep.subr.bf16.mxu0 %v740
        %802 = vmatpush2.bf16.msra.mxu0 %v739
        %803 = vmatprep.subr.bf16.mxu0 %v738
        %804 = vmatpush2.bf16.msra.mxu0 %v737
        %805 = vmatprep.subr.bf16.mxu0 %v736
        %806 = vmatpush2.bf16.msra.mxu0 %v735
        %807 = vmatprep.subr.bf16.mxu0 %v734
        %808 = vmatpush2.bf16.msra.mxu0 %v733
        %809 = vmatprep.subr.bf16.mxu0 %v732
        %810 = vmatpush2.bf16.msra.mxu0 %v731
        %811 = vmatprep.mubr.bf16.mxu0 %v574
        %812 = vmatmul.mubr.bf16.gmra.mxu0 %v573
        %v813 = vpop.f32.mrf.mxu0
        %v814 = vadd.f32 %v612, %v813
        %v815 = vpop.f32.mrf.mxu0
        %v816 = vadd.f32 %v616, %v815
        %v817 = vpop.f32.mrf.mxu0
        %v818 = vadd.f32 %v612, %v817
        %v819 = vpop.f32.mrf.mxu0
        %v820 = vadd.f32 %v616, %v819
        %821 = vdwg.mxu0
        %v822 = vmax.f32 %v814, 0.0
        %v823 = vmax.f32 %v816, 0.0
        %v824 = vmax.f32 %v818, 0.0
        %v825 = vmax.f32 %v820, 0.0
        %v826 = vpack.c.bf16 %v824, %v822
        %v827 = vpack.c.bf16 %v825, %v823
        %v828 = vld [vmem:[%s5] sm:$0xf]
        %v829 = vld [vmem:[%s5 + $0x4] sm:$0xf]
        %v830 = vld [vmem:[%s5 + $0x8] sm:$0xf]
        %v831 = vld [vmem:[%s5 + $0xc] sm:$0xf]
        %v832 = vld [vmem:[%s5 + $0x10] sm:$0xf]
        %v833 = vld [vmem:[%s5 + $0x14] sm:$0xf]
        %v834 = vld [vmem:[%s5 + $0x18] sm:$0xf]
        %v835 = vld [vmem:[%s5 + $0x1c] sm:$0xf]
        %v836 = vld [vmem:[%s5 + $0x20] sm:$0xf]
        %v837 = vld [vmem:[%s5 + $0x24] sm:$0xf]
        %v838 = vld [vmem:[%s5 + $0x28] sm:$0xf]
        %v839 = vld [vmem:[%s5 + $0x2c] sm:$0xf]
        %v840 = vld [vmem:[%s5 + $0x30] sm:$0xf]
        %v841 = vld [vmem:[%s5 + $0x34] sm:$0xf]
        %v842 = vld [vmem:[%s5 + $0x38] sm:$0xf]
        %v843 = vld [vmem:[%s5 + $0x3c] sm:$0xf]
        %v844 = vld [vmem:[%s5 + $0x40] sm:$0xf]
        %v845 = vld [vmem:[%s5 + $0x44] sm:$0xf]
        %v846 = vld [vmem:[%s5 + $0x48] sm:$0xf]
        %v847 = vld [vmem:[%s5 + $0x4c] sm:$0xf]
        %v848 = vld [vmem:[%s5 + $0x50] sm:$0xf]
        %v849 = vld [vmem:[%s5 + $0x54] sm:$0xf]
        %v850 = vld [vmem:[%s5 + $0x58] sm:$0xf]
        %v851 = vld [vmem:[%s5 + $0x5c] sm:$0xf]
        %v852 = vld [vmem:[%s5 + $0x60] sm:$0xf]
        %v853 = vld [vmem:[%s5 + $0x64] sm:$0xf]
        %v854 = vld [vmem:[%s5 + $0x68] sm:$0xf]
        %v855 = vld [vmem:[%s5 + $0x6c] sm:$0xf]
        %v856 = vld [vmem:[%s5 + $0x70] sm:$0xf]
        %v857 = vld [vmem:[%s5 + $0x74] sm:$0xf]
        %v858 = vld [vmem:[%s5 + $0x78] sm:$0xf]
        %v859 = vld [vmem:[%s5 + $0x7c] sm:$0xf]
        %v860 = vld [vmem:[%s6] sm:$0x1]
        %v862 = vlaneseq
        %v863 = vshrl.u32 %v862, 7
        %v864 = vsub.s32 0, %v863
        %v865 = vrot.slane %v860, %v864
        %v899 = vunpack.c.l.b16 %v828
        %v900 = vunpack.c.l.b16 %v829
        %v901 = vunpack.c.l.b16 %v830
        %v902 = vunpack.c.l.b16 %v831
        %v903 = vunpack.c.l.b16 %v832
        %v904 = vunpack.c.l.b16 %v833
        %v905 = vunpack.c.l.b16 %v834
        %v906 = vunpack.c.l.b16 %v835
        %v907 = vunpack.c.l.b16 %v836
        %v908 = vunpack.c.l.b16 %v837
        %v909 = vunpack.c.l.b16 %v838
        %v910 = vunpack.c.l.b16 %v839
        %v911 = vunpack.c.l.b16 %v840
        %v912 = vunpack.c.l.b16 %v841
        %v913 = vunpack.c.l.b16 %v842
        %v914 = vunpack.c.l.b16 %v843
        %v915 = vunpack.c.l.b16 %v844
        %v916 = vunpack.c.l.b16 %v845
        %v917 = vunpack.c.l.b16 %v846
        %v918 = vunpack.c.l.b16 %v847
        %v919 = vunpack.c.l.b16 %v848
        %v920 = vunpack.c.l.b16 %v849
        %v921 = vunpack.c.l.b16 %v850
        %v922 = vunpack.c.l.b16 %v851
        %v923 = vunpack.c.l.b16 %v852
        %v924 = vunpack.c.l.b16 %v853
        %v925 = vunpack.c.l.b16 %v854
        %v926 = vunpack.c.l.b16 %v855
        %v927 = vunpack.c.l.b16 %v856
        %v928 = vunpack.c.l.b16 %v857
        %v929 = vunpack.c.l.b16 %v858
        %v930 = vunpack.c.l.b16 %v859
        %v931 = vpack.c.b16 %v900, %v899
        %v932 = vpack.c.b16 %v902, %v901
        %v933 = vpack.c.b16 %v904, %v903
        %v934 = vpack.c.b16 %v906, %v905
        %v935 = vpack.c.b16 %v908, %v907
        %v936 = vpack.c.b16 %v910, %v909
        %v937 = vpack.c.b16 %v912, %v911
        %v938 = vpack.c.b16 %v914, %v913
        %v939 = vpack.c.b16 %v916, %v915
        %v940 = vpack.c.b16 %v918, %v917
        %v941 = vpack.c.b16 %v920, %v919
        %v942 = vpack.c.b16 %v922, %v921
        %v943 = vpack.c.b16 %v924, %v923
        %v944 = vpack.c.b16 %v926, %v925
        %v945 = vpack.c.b16 %v928, %v927
        %v946 = vpack.c.b16 %v930, %v929
        %963 = vmatprep.subr.bf16.mxu0 0
        %964 = vmatpush1.bf16.msra.mxu0 %v938
        %965 = vmatprep.subr.bf16.mxu0 0
        %966 = vmatpush1.bf16.msra.mxu0 %v937
        %967 = vmatprep.subr.bf16.mxu0 0
        %968 = vmatpush1.bf16.msra.mxu0 %v936
        %969 = vmatprep.subr.bf16.mxu0 0
        %970 = vmatpush1.bf16.msra.mxu0 %v935
        %971 = vmatprep.subr.bf16.mxu0 0
        %972 = vmatpush1.bf16.msra.mxu0 %v934
        %973 = vmatprep.subr.bf16.mxu0 0
        %974 = vmatpush1.bf16.msra.mxu0 %v933
        %975 = vmatprep.subr.bf16.mxu0 0
        %976 = vmatpush1.bf16.msra.mxu0 %v932
        %977 = vmatprep.subr.bf16.mxu0 0
        %978 = vmatpush1.bf16.msra.mxu0 %v931
        %979 = vmatprep.subr.bf16.mxu0 0
        %980 = vmatpush2.bf16.msra.mxu0 %v946
        %981 = vmatprep.subr.bf16.mxu0 0
        %982 = vmatpush2.bf16.msra.mxu0 %v945
        %983 = vmatprep.subr.bf16.mxu0 0
        %984 = vmatpush2.bf16.msra.mxu0 %v944
        %985 = vmatprep.subr.bf16.mxu0 0
        %986 = vmatpush2.bf16.msra.mxu0 %v943
        %987 = vmatprep.subr.bf16.mxu0 0
        %988 = vmatpush2.bf16.msra.mxu0 %v942
        %989 = vmatprep.subr.bf16.mxu0 0
        %990 = vmatpush2.bf16.msra.mxu0 %v941
        %991 = vmatprep.subr.bf16.mxu0 0
        %992 = vmatpush2.bf16.msra.mxu0 %v940
        %993 = vmatprep.subr.bf16.mxu0 0
        %994 = vmatpush2.bf16.msra.mxu0 %v939
        %995 = vmatprep.mubr.bf16.mxu0 %v827
        %996 = vmatmul.mubr.bf16.gmra.mxu0 %v826
        %v997 = vpop.f32.mrf.mxu0
        %v998 = vadd.f32 %v865, %v997
        %v999 = vpop.f32.mrf.mxu0
        %v1000 = vpop.f32.mrf.mxu0
        %v1001 = vadd.f32 %v865, %v1000
        %v1002 = vpop.f32.mrf.mxu0
        %1003 = vdwg.mxu0
        %v1004 = vand.u32 2147483647, %v998
        %v1005 = vand.u32 2147483647, %v1001
        %v1006 = vsub.f32 0.0, %v1004
        %v1007 = vsub.f32 0.0, %v1005
        %v1008 = vmul.f32 %v1006, 1.442695
        %v1009 = vpow.pop %v1008
        %v1010 = vmul.f32 %v1007, 1.442695
        %v1011 = vpow.pop %v1010
        %v1012 = vadd.f32 %v1009, 1.0
        %v1013 = vadd.f32 %v1011, 1.0
        %v1014 = vmax.f32 %v998, 0.0
        %v1015 = vmax.f32 %v1001, 0.0
        %v1016 = vlog2.pop %v1012
        %v1017 = vmul.f32 %v1016, 0.6931472
        %v1018 = vlog2.pop %v1013
        %v1019 = vmul.f32 %v1018, 0.6931472
        %v1020 = vadd.f32 %v1014, %v1017
        %v1021 = vadd.f32 %v1015, %v1019
        %v1022 = vrcp.pop %v1012
        %v1023 = vrcp.pop %v1013
        %vm1024 = vcmp.ge.f32.partialorder %v998, 0.0
        %vm1025 = vcmp.ge.f32.partialorder %v1001, 0.0
        %v1026 = vmul.f32 %v1009, %v1022
        %v1027 = vmul.f32 %v1011, %v1023
        %v1028 = vsel %vm1024, %v1022, %v1026
        %v1029 = vsel %vm1025, %v1023, %v1027
        %v1030 = vlaneseq
        %v1031 = vand.u32 %v1030, 127
        %vm1032 = vcmp.eq.s32.totalorder %v1031, 0
        %vm1033 = vcmp.le.s32.totalorder %v1031, 2
        %vm1034 = vcmp.eq.s32.totalorder %v1031, 3
        %v1035 = vadd.f32 %v1020, 1e-12
        %v1036 = vadd.f32 %v1021, 1e-12
        %v1037 = vsel %vm1034, %v1035, %v1020
        %v1038 = vsel %vm1034, %v1036, %v1021
        %v1039 = vsel %vm1033, %v998, %v1037
        %v1040 = vsel %vm1033, %v1001, %v1038
        %v1041 = vsel %vm1032, %v1028, %v1039
        %v1042 = vsel %vm1032, %v1029, %v1040
        %vm1043 = vcmask 64512
        %1044 = vst.msk [vmem:[%s313] sm:$0xff] %vm1043, %v1041
        %1045 = vst.msk [vmem:[%s313 + $0x8] sm:$0xff] %vm1043, %v1042
        %s1046 = smul.u32 2, %s20
        %p1047 = scmp.lt.s32.totalorder %s1046, 3
        %s1048 = scalar_select %p1047, %s1046, 3
        %s1049 = smul.addr %s1048, 8
        %s1050 = scalar_lea.vmem %s7, %s1049
        // Predicated region
        $region57: #{pres_where_mlp.1} parent=47 // pred_check
          %p1051 = pneg %p190
        $region58: #{pres_where_mlp.1} parent=47 // pred_check_branch
          %1053 = sbr.rel (%p1051) target = $region60
        $region59: #{pres_where_mlp.1} parent=47 // pred_region
          %s1054 = smul.u32 2, %s20
        $region60: #{pres_where_mlp.1} parent=47 // pred_fallthru
          _
      $region48: #{pres_where_mlp.1} parent=5 // pred_fallthru
        _
      %p1055 = scmp.le.s32.totalorder 2, %s15
      // Predicated region
      $region61: #{pres_where_mlp.1} parent=5 // pred_check
        %p1056 = pneg %p1055
      $region62: #{pres_where_mlp.1} parent=5 // pred_check_branch
        %1058 = sbr.rel (%p1056) target = $region64
      $region63: #{pres_where_mlp.1} parent=5 // pred_region
        %s1059 = ssub.s32 %s15, 2
        // Predicated region
        $region65: #{pres_where_mlp.1} parent=63 // pred_check
          %p1060 = pneg %p196
        $region66: #{pres_where_mlp.1} parent=63 // pred_check_branch
          %1062 = sbr.rel (%p1060) target = $region68
        $region67: #{pres_where_mlp.1} parent=63 // pred_region
          %s1063 = smul.u32 2, %s21
          %p1064 = scmp.lt.s32.totalorder %s1063, 3
          %s1065 = scalar_select %p1064, %s1063, 3
          %s1066 = smul.addr %s1065, 8
          %s1067 = scalar_lea.vmem %s7, %s1066
        $region68: #{pres_where_mlp.1} parent=63 // pred_fallthru
          _
      $region64: #{pres_where_mlp.1} parent=5 // pred_fallthru
        _
    $region6: #{pres_where_mlp.1} parent=1 // loop_footer
      %s19 = sadd.s32 1, %s15
    $region7: #{pres_where_mlp.1} parent=1 // loop_footer_branch
      %14 = sbr.rel target = $region3
    $region8: #{pres_where_mlp.1} parent=1 // loop_exit
      _
    %1068 = vsyncpa [#allocation3], 1
    %s1069 = scalar_lea.sflag [#allocation3], 1
    %1070 = vsyncpa %s1069, 1
    %1071 = vsyncpa [#allocation5], 1

</llo_original>
